<compile_context>
chip_gen: v6e
topology: v6e:2x2x1
jax: 0.10.0
libtpu: 0.0.40
codegen_flags: <defaults>
</compile_context>

<pallas_src>
import functools

import jax
import jax.numpy as jnp
from jax.experimental import pallas as pl
from jax.experimental.pallas import tpu as pltpu


# ----------------------------- Pallas kernel -------------------------------

def _linear_kernel(x_ref, w_ref, b_ref, o_ref, acc_ref):
    """One (tm, tn) output tile; K-reduction runs over grid axis 2."""
    k = pl.program_id(2)

    @pl.when(k == 0)
    def _():
        acc_ref[...] = jnp.zeros_like(acc_ref)

    acc_ref[...] += jnp.dot(
        x_ref[...], w_ref[...], preferred_element_type=jnp.float32
    )

    @pl.when(k == pl.num_programs(2) - 1)
    def _():
        # Epilogue only: bias add (f32) + single cast to the output dtype.
        o_ref[...] = (acc_ref[...] + b_ref[...]).astype(o_ref.dtype)


# ------------------------------ Wrappers -----------------------------------

def _round_up(x: int, m: int) -> int:
    return (x + m - 1) // m * m


def pallas_linear(
    x2d: jax.Array,
    w_kn: jax.Array,
    b_n: jax.Array,
    *,
    compute_dtype=jnp.bfloat16,
    out_dtype=None,
) -> jax.Array:
    """y = x2d @ w_kn + b_n with a tiled, double-buffered Pallas matmul.

    x2d: (M, K), w_kn: (K, N) (already transposed once at init), b_n: (N,).
    """
    M, K = x2d.shape
    K2, N = w_kn.shape
    assert K == K2, (K, K2)
    out_dtype = out_dtype or x2d.dtype

    # --- tile selection -----------------------------------------------------
    # Lane-dense tiles (tn, tk multiples of 128; tm multiple of 16 for bf16).
    # Sized so that 2x double-buffered bf16 inputs + f32 accumulator + output
    # stay a few MiB — comfortably within v7x's 64 MiB VMEM, and trivially
    # within v6e/v5e budgets.
    sublane = 16 if compute_dtype == jnp.bfloat16 else 8
    tm = min(512, _round_up(M, sublane))
    tn = min(256, _round_up(N, 128))
    tk = min(1024, _round_up(K, 128))

    Mp, Np, Kp = _round_up(M, tm), _round_up(N, tn), _round_up(K, tk)

    # --- boundary glue: cast + pad (outside the hot loop) --------------------
    xp = x2d.astype(compute_dtype)
    wp = w_kn.astype(compute_dtype)
    bp = b_n.astype(jnp.float32).reshape(1, N)
    if (Mp, Kp) != (M, K):
        xp = jnp.pad(xp, ((0, Mp - M), (0, Kp - K)))
    if (Kp, Np) != (K, N):
        wp = jnp.pad(wp, ((0, Kp - K), (0, Np - N)))
    if Np != N:
        bp = jnp.pad(bp, ((0, 0), (0, Np - N)))

    grid = (Mp // tm, Np // tn, Kp // tk)

    out = pl.pallas_call(
        _linear_kernel,
        out_shape=jax.ShapeDtypeStruct((Mp, Np), out_dtype),
        grid_spec=pltpu.PrefetchScalarGridSpec(
            num_scalar_prefetch=0,
            grid=grid,
            in_specs=[
                pl.BlockSpec((tm, tk), lambda i, j, k: (i, k)),   # x
                pl.BlockSpec((tk, tn), lambda i, j, k: (k, j)),   # w
                pl.BlockSpec((1, tn), lambda i, j, k: (0, j)),    # bias
            ],
            out_specs=pl.BlockSpec((tm, tn), lambda i, j, k: (i, j)),
            scratch_shapes=[pltpu.VMEM((tm, tn), jnp.float32)],
        ),
        compiler_params=pltpu.CompilerParams(
            dimension_semantics=("parallel", "parallel", "arbitrary"),
            vmem_limit_bytes=48 * 1024 * 1024,
        ),
    )(xp, wp, bp)

    if (Mp, Np) != (M, N):
        out = out[:M, :N]
    return out


# --------------------- ActSampler: identity forward -------------------------

@jax.custom_vjp
def act_sampler(x):
    """sampling.Function.forward(ctx, input, scheme, idx) -> input (identity).

    No Pallas call: the forward pass moves zero bytes. The real work of the
    original module lives only in backward().
    """
    return x


def _act_sampler_fwd(x):
    return x, None


def _act_sampler_bwd(_, g):
    # TODO(synk): backward gradient-norm sub-sampling (soft_topk / mask /
    # rescale + mutable `scheme` statistics) needs autograd-time state and is
    # not part of the forward spec; pass the gradient through unchanged.
    return (g,)


act_sampler.defvjp(_act_sampler_fwd, _act_sampler_bwd)


# --------------------------- Module composition ------------------------------

def init_params(key, hidden: int, out: int, dtype=jnp.float32):
    """Inner Linear module params; weight stored pre-transposed as (K, N)."""
    kw, kb = jax.random.split(key)
    bound = 1.0 / jnp.sqrt(hidden)
    w_oi = jax.random.uniform(kw, (out, hidden), dtype, -bound, bound)  # (out, in)
    b = jax.random.uniform(kb, (out,), dtype, -bound, bound)
    return {"w_kn": jnp.asarray(w_oi.T), "b": b}   # transpose ONCE at init


def inner_module(x: jax.Array, params) -> tuple:
    """The wrapped `module`: a Linear layer that returns a 1-tuple."""
    B, S, D = x.shape
    x2d = x.reshape(B * S, D)
    y2d = pallas_linear(x2d, params["w_kn"], params["b"])
    return (y2d.reshape(B, S, -1),)


@functools.partial(jax.jit, static_argnames=())
def sequential_forward(x: jax.Array, params) -> tuple:
    """Exact forward of vcas Sequential(module, act_sampler)."""
    output = inner_module(x, params)
    layer_output = act_sampler(output[0])   # identity forward, no extra kernel
    if len(output) > 1:
        return (layer_output,) + output[1:]
    return (layer_output,)


# --------------------------------- Main --------------------------------------

if __name__ == "__main__":
    key = jax.random.PRNGKey(0)
    kx, kp = jax.random.split(key)

    batch, seq, hidden = 2, 8, 128          # M=16, K=N=128 (lane-dense)
    x = jax.random.normal(kx, (batch, seq, hidden), jnp.float32)
    params = init_params(kp, hidden, hidden)

    out = sequential_forward(x, params)
    (y,) = out
    y = jax.block_until_ready(y)

    # Pure-JAX reference with the same bf16-input / f32-accum contract.
    x_bf = x.reshape(-1, hidden).astype(jnp.bfloat16).astype(jnp.float32)
    w_bf = params["w_kn"].astype(jnp.bfloat16).astype(jnp.float32)
    ref = (x_bf @ w_bf + params["b"]).reshape(batch, seq, hidden)

    assert y.shape == (batch, seq, hidden)
    assert y.dtype == x.dtype
    assert jnp.allclose(y, ref, atol=1e-3, rtol=1e-3), float(
        jnp.max(jnp.abs(y - ref))
    )

    print("KERNEL_OK")
</pallas_src>

<mosaic_0001>
module attributes {stable_mosaic.version = 11 : i64} {
  func.func @_linear_kernel(%arg0: i32, %arg1: i32, %arg2: i32, %arg3: memref<16x128xbf16, #tpu.memory_space<vmem>>, %arg4: memref<128x128xbf16, #tpu.memory_space<vmem>>, %arg5: memref<1x128xf32, #tpu.memory_space<vmem>>, %arg6: memref<16x128xf32, #tpu.memory_space<vmem>>, %arg7: memref<16x128xf32, #tpu.memory_space<vmem>>) attributes {dimension_semantics = [#tpu.dimension_semantics<parallel>, #tpu.dimension_semantics<parallel>, #tpu.dimension_semantics<arbitrary>], iteration_bounds = array<i64: 1, 1, 1>, scalar_prefetch = 0 : i64, scratch_operands = 1 : i64, tpu.core_type = #tpu.core_type<tc>, window_params = [{transform_indices = @transform_0, window_bounds = array<i64: 16, 128>}, {transform_indices = @transform_1, window_bounds = array<i64: 128, 128>}, {transform_indices = @transform_2, window_bounds = array<i64: 1, 128>}, {transform_indices = @transform_3, window_bounds = array<i64: 16, 128>}]} {
    %c0_i32 = arith.constant 0 : i32
    %0 = arith.cmpi eq, %arg2, %c0_i32 : i32
    %1 = arith.extui %0 : i1 to i32
    %c0_i32_0 = arith.constant 0 : i32
    %2 = arith.cmpi ne, %1, %c0_i32_0 : i32
    scf.if %2 {
      %cst_10 = arith.constant 0.000000e+00 : f32
      %12 = vector.broadcast %cst_10 : f32 to vector<16x128xf32>
      %c0_11 = arith.constant 0 : index
      %c0_12 = arith.constant 0 : index
      %13 = vector.load %arg7[%c0_11, %c0_12] : memref<16x128xf32, #tpu.memory_space<vmem>>, vector<16x128xf32>
      tpu.vector_store %arg7[%c0_11, %c0_12], %12 {strides = array<i32>} : memref<16x128xf32, #tpu.memory_space<vmem>>, vector<16x128xf32>,
    } else {
    }
    %c0 = arith.constant 0 : index
    %c0_1 = arith.constant 0 : index
    %3 = vector.load %arg7[%c0, %c0_1] : memref<16x128xf32, #tpu.memory_space<vmem>>, vector<16x128xf32>
    %c0_2 = arith.constant 0 : index
    %c0_3 = arith.constant 0 : index
    %4 = vector.load %arg3[%c0_2, %c0_3] : memref<16x128xbf16, #tpu.memory_space<vmem>>, vector<16x128xbf16>
    %c0_4 = arith.constant 0 : index
    %c0_5 = arith.constant 0 : index
    %5 = vector.load %arg4[%c0_4, %c0_5] : memref<128x128xbf16, #tpu.memory_space<vmem>>, vector<128x128xbf16>
    %cst = arith.constant dense<0.000000e+00> : vector<16x128xf32>
    %6 = tpu.matmul %4, %5, %cst {dimension_numbers = #tpu.dot_dimension_numbers<[1], [0], [0], [1], [0, 0, 1, 1], [], []>} : vector<16x128xbf16>, vector<128x128xbf16>, vector<16x128xf32> -> vector<16x128xf32>
    %7 = arith.addf %3, %6 : vector<16x128xf32>
    %c0_6 = arith.constant 0 : index
    %c0_7 = arith.constant 0 : index
    %8 = vector.load %arg7[%c0_6, %c0_7] : memref<16x128xf32, #tpu.memory_space<vmem>>, vector<16x128xf32>
    tpu.vector_store %arg7[%c0_6, %c0_7], %7 {strides = array<i32>} : memref<16x128xf32, #tpu.memory_space<vmem>>, vector<16x128xf32>,
    %c0_i32_8 = arith.constant 0 : i32
    %9 = arith.cmpi eq, %arg2, %c0_i32_8 : i32
    %10 = arith.extui %9 : i1 to i32
    %c0_i32_9 = arith.constant 0 : i32
    %11 = arith.cmpi ne, %10, %c0_i32_9 : i32
    scf.if %11 {
      %c0_10 = arith.constant 0 : index
      %c0_11 = arith.constant 0 : index
      %12 = vector.load %arg7[%c0_10, %c0_11] : memref<16x128xf32, #tpu.memory_space<vmem>>, vector<16x128xf32>
      %c0_12 = arith.constant 0 : index
      %c0_13 = arith.constant 0 : index
      %13 = vector.load %arg5[%c0_12, %c0_13] : memref<1x128xf32, #tpu.memory_space<vmem>>, vector<1x128xf32>
      %14 = vector.broadcast %13 : vector<1x128xf32> to vector<16x128xf32>
      %15 = arith.addf %12, %14 : vector<16x128xf32>
      %c0_14 = arith.constant 0 : index
      %c0_15 = arith.constant 0 : index
      %16 = vector.load %arg6[%c0_14, %c0_15] : memref<16x128xf32, #tpu.memory_space<vmem>>, vector<16x128xf32>
      tpu.vector_store %arg6[%c0_14, %c0_15], %15 {strides = array<i32>} : memref<16x128xf32, #tpu.memory_space<vmem>>, vector<16x128xf32>,
    } else {
    }
    return
  }
  func.func @transform_0(%arg0: i32, %arg1: i32, %arg2: i32) -> (i32, i32) {
    %c0_i32 = arith.constant 0 : i32
    return %arg0, %arg2 : i32, i32
  }
  func.func @transform_1(%arg0: i32, %arg1: i32, %arg2: i32) -> (i32, i32) {
    %c0_i32 = arith.constant 0 : i32
    return %arg2, %arg1 : i32, i32
  }
  func.func @transform_2(%arg0: i32, %arg1: i32, %arg2: i32) -> (i32, i32) {
    %c0_i32 = arith.constant 0 : i32
    %c0_i32_0 = arith.constant 0 : i32
    return %c0_i32, %arg1 : i32, i32
  }
  func.func @transform_3(%arg0: i32, %arg1: i32, %arg2: i32) -> (i32, i32) {
    %c0_i32 = arith.constant 0 : i32
    return %arg0, %arg1 : i32, i32
  }
}

</mosaic_0001>

<llo_original>
// kernel: sequential_forward.1
$region0: #{sequential_forward.1}
  #allocation0 [shape = 'u32[]', space=smem, size = 0x4, offset = 0x4, fixed_abs, tag = 'smem constant byte address 0x4 - core index']
  #allocation1 [shape = 'u32[144,128]{1,0:T(1,128)}', space=vmem, size = 0x12000, scoped, tag = 'internal scratch']
  #allocation2 [shape = 'f32[16,128]{1,0:T(8,128)}', space=vmem, size = 0x2000, scoped, tag = 'scratch operand']
  %s0 = inlined_call_operand.vmem [shape: bf16[16,128], index: 0, kind: input, shape index: {}]
  %s1 = inlined_call_operand.vmem [shape: bf16[128,128], index: 1, kind: input, shape index: {}]
  %s2 = inlined_call_operand.vmem [shape: f32[1,128], index: 2, kind: input, shape index: {}]
  %s3 = inlined_call_operand.hbm [shape: f32[16,128], index: 3, kind: output, shape index: {}]
  %s4 = sld [smem:[#allocation0]]
  $region30: #{sequential_forward.1} parent=0
    _
  %s6 = ssub.s32 1, %s4
  %s7 = scalar_select 0, %s6, %s4
  $region1: #{sequential_forward.1} parent=0
    #allocation3 [shape = 'u8[8192]{0}', space=vmem, size = 0x2000, scoped, tag = 'output window, operand 0, single buffered']
    #allocation4 [shape = 's32[1]{0}', space=sflag, size = 0x4, scoped, tag = 'scoped memory for sequential_forward.1']
    %8 = vsyncpa [#allocation4], 0
    // Predicated region
    $region2: #{sequential_forward.1} parent=1 // pred_check
      _
    $region3: #{sequential_forward.1} parent=1 // pred_check_branch
      %10 = sbr.rel (0) target = $region5
    $region4: #{sequential_forward.1} parent=1 // pred_region
      _
    $region5: #{sequential_forward.1} parent=1 // pred_fallthru
      _
    // Predicated region
    $region6: #{sequential_forward.1} parent=1 // pred_check
      _
    $region7: #{sequential_forward.1} parent=1 // pred_check_branch
      %12 = sbr.rel (0) target = $region9
    $region8: #{sequential_forward.1} parent=1 // pred_region
      _
    $region9: #{sequential_forward.1} parent=1 // pred_fallthru
      _
    // Predicated region
    $region10: #{sequential_forward.1} parent=1 // pred_check
      _
    $region11: #{sequential_forward.1} parent=1 // pred_check_branch
      %14 = sbr.rel (0) target = $region13
    $region12: #{sequential_forward.1} parent=1 // pred_region
      _
    $region13: #{sequential_forward.1} parent=1 // pred_fallthru
      _
    %p16 = scmp.eq.s32.totalorder 0, 0
    // Predicated region
    $region14: #{sequential_forward.1} parent=1 // pred_check
      %p17 = pneg %p16
    $region15: #{sequential_forward.1} parent=1 // pred_check_branch
      %19 = sbr.rel (%p17) target = $region17
    $region16: #{sequential_forward.1} parent=1 // pred_region
      %20 = vst [vmem:[#allocation2] sm:$0xff] 0.0
      %21 = vst [vmem:[#allocation2 + $0x8] sm:$0xff] 0.0
    $region17: #{sequential_forward.1} parent=1 // pred_fallthru
      _
    %v22 = vld [vmem:[#allocation2] sm:$0xff]
    %v23 = vld [vmem:[#allocation2 + $0x8] sm:$0xff]
    %v24 = vld [vmem:[%s0] sm:$0xf]
    %v25 = vld [vmem:[%s0 + $0x4] sm:$0xf]
    %v26 = vld [vmem:[%s1] sm:$0xf]
    %v27 = vld [vmem:[%s1 + $0x4] sm:$0xf]
    %v28 = vld [vmem:[%s1 + $0x8] sm:$0xf]
    %v29 = vld [vmem:[%s1 + $0xc] sm:$0xf]
    %v30 = vld [vmem:[%s1 + $0x10] sm:$0xf]
    %v31 = vld [vmem:[%s1 + $0x14] sm:$0xf]
    %v32 = vld [vmem:[%s1 + $0x18] sm:$0xf]
    %v33 = vld [vmem:[%s1 + $0x1c] sm:$0xf]
    %v34 = vld [vmem:[%s1 + $0x20] sm:$0xf]
    %v35 = vld [vmem:[%s1 + $0x24] sm:$0xf]
    %v36 = vld [vmem:[%s1 + $0x28] sm:$0xf]
    %v37 = vld [vmem:[%s1 + $0x2c] sm:$0xf]
    %v38 = vld [vmem:[%s1 + $0x30] sm:$0xf]
    %v39 = vld [vmem:[%s1 + $0x34] sm:$0xf]
    %v40 = vld [vmem:[%s1 + $0x38] sm:$0xf]
    %v41 = vld [vmem:[%s1 + $0x3c] sm:$0xf]
    %v44 = vunpack.c.l.b16 %v24
    %v45 = vunpack.c.l.b16 %v25
    %v46 = vpack.c.b16 %v45, %v44
    %v64 = vunpack.c.l.b16 %v26
    %v65 = vunpack.c.l.b16 %v27
    %v66 = vunpack.c.l.b16 %v28
    %v67 = vunpack.c.l.b16 %v29
    %v68 = vunpack.c.l.b16 %v30
    %v69 = vunpack.c.l.b16 %v31
    %v70 = vunpack.c.l.b16 %v32
    %v71 = vunpack.c.l.b16 %v33
    %v72 = vunpack.c.l.b16 %v34
    %v73 = vunpack.c.l.b16 %v35
    %v74 = vunpack.c.l.b16 %v36
    %v75 = vunpack.c.l.b16 %v37
    %v76 = vunpack.c.l.b16 %v38
    %v77 = vunpack.c.l.b16 %v39
    %v78 = vunpack.c.l.b16 %v40
    %v79 = vunpack.c.l.b16 %v41
    %v80 = vpack.c.b16 %v65, %v64
    %v81 = vpack.c.b16 %v67, %v66
    %v82 = vpack.c.b16 %v69, %v68
    %v83 = vpack.c.b16 %v71, %v70
    %v84 = vpack.c.b16 %v73, %v72
    %v85 = vpack.c.b16 %v75, %v74
    %v86 = vpack.c.b16 %v77, %v76
    %v87 = vpack.c.b16 %v79, %v78
    %96 = vmatprep.subr.bf16.mxu0 0
    %97 = vmatpush1.bf16.msra.mxu0 %v87
    %98 = vmatprep.subr.bf16.mxu0 0
    %99 = vmatpush1.bf16.msra.mxu0 %v86
    %100 = vmatprep.subr.bf16.mxu0 0
    %101 = vmatpush1.bf16.msra.mxu0 %v85
    %102 = vmatprep.subr.bf16.mxu0 0
    %103 = vmatpush1.bf16.msra.mxu0 %v84
    %104 = vmatprep.subr.bf16.mxu0 0
    %105 = vmatpush1.bf16.msra.mxu0 %v83
    %106 = vmatprep.subr.bf16.mxu0 0
    %107 = vmatpush1.bf16.msra.mxu0 %v82
    %108 = vmatprep.subr.bf16.mxu0 0
    %109 = vmatpush1.bf16.msra.mxu0 %v81
    %110 = vmatprep.subr.bf16.mxu0 0
    %111 = vmatpush1.bf16.msra.mxu0 %v80
    %112 = vmatprep.subr.bf16.mxu0 0
    %113 = vmatpush2.bf16.msra.mxu0 0
    %114 = vmatprep.subr.bf16.mxu0 0
    %115 = vmatpush2.bf16.msra.mxu0 0
    %116 = vmatprep.subr.bf16.mxu0 0
    %117 = vmatpush2.bf16.msra.mxu0 0
    %118 = vmatprep.subr.bf16.mxu0 0
    %119 = vmatpush2.bf16.msra.mxu0 0
    %120 = vmatprep.subr.bf16.mxu0 0
    %121 = vmatpush2.bf16.msra.mxu0 0
    %122 = vmatprep.subr.bf16.mxu0 0
    %123 = vmatpush2.bf16.msra.mxu0 0
    %124 = vmatprep.subr.bf16.mxu0 0
    %125 = vmatpush2.bf16.msra.mxu0 0
    %126 = vmatprep.subr.bf16.mxu0 0
    %127 = vmatpush2.bf16.msra.mxu0 0
    %128 = vmatprep.mubr.bf16.mxu0 0
    %129 = vmatmul.mubr.bf16.gmra.mxu0 %v46
    %v130 = vpop.f32.mrf.mxu0
    %v131 = vadd.f32 0.0, %v130
    %v132 = vpop.f32.mrf.mxu0
    %v133 = vpop.f32.mrf.mxu0
    %v134 = vadd.f32 0.0, %v133
    %v135 = vpop.f32.mrf.mxu0
    %136 = vdwg.mxu0
    %v137 = vadd.f32 %v22, %v131
    %v138 = vadd.f32 %v23, %v134
    %139 = vst [vmem:[#allocation2] sm:$0xff] %v137
    %140 = vst [vmem:[#allocation2 + $0x8] sm:$0xff] %v138
    // Predicated region
    $region18: #{sequential_forward.1} parent=1 // pred_check
      %p141 = pneg %p16
    $region19: #{sequential_forward.1} parent=1 // pred_check_branch
      %143 = sbr.rel (%p141) target = $region21
    $region20: #{sequential_forward.1} parent=1 // pred_region
      %v144 = vld [vmem:[#allocation2] sm:$0xff]
      %v145 = vld [vmem:[#allocation2 + $0x8] sm:$0xff]
      %v146 = vld [vmem:[%s2] sm:$0x1]
      %v148 = vlaneseq
      %v149 = vshrl.u32 %v148, 7
      %v150 = vsub.s32 0, %v149
      %v151 = vrot.slane %v146, %v150
      %v153 = vadd.f32 %v144, %v151
      %v154 = vadd.f32 %v145, %v151
      %155 = vst [vmem:[#allocation3] sm:$0xff] %v153
      %156 = vst [vmem:[#allocation3 + $0x8] sm:$0xff] %v154
    $region21: #{sequential_forward.1} parent=1 // pred_fallthru
      _
    // Predicated region
    $region22: #{sequential_forward.1} parent=1 // pred_check
      _
    $region23: #{sequential_forward.1} parent=1 // pred_check_branch
      %158 = sbr.rel (0) target = $region25
    $region24: #{sequential_forward.1} parent=1 // pred_region
      %s160 = ssub.s32 256, 256
      %161 = vsyncadd [#allocation4], %s160
      %s162 = sshll.u32 [#allocation3], 4
      %s163 = int_to_ptr.vmem [resolvable:$true] %s162
      %168 = dma.vmem_to_hbm [thread:$0]  %s163, 256, %s3, [#allocation4], 128, 128, 8
    $region25: #{sequential_forward.1} parent=1 // pred_fallthru
      _
    // Predicated region
    $region26: #{sequential_forward.1} parent=1 // pred_check
      _
    $region27: #{sequential_forward.1} parent=1 // pred_check_branch
      %170 = sbr.rel (0) target = $region29
    $region28: #{sequential_forward.1} parent=1 // pred_region
      %171 = dma.done [#allocation4], 256
    $region29: #{sequential_forward.1} parent=1 // pred_fallthru
      _
    %172 = vsyncpa [#allocation4], 1

</llo_original>
